<compile_context>
chip_gen: v7x
topology: tpu7x:2x2x1
jax: 0.10.0
libtpu: 0.0.40
codegen_flags: <defaults>
</compile_context>

<pallas_src>
import jax
import jax.numpy as jnp
from jax.experimental import pallas as pl
from jax.experimental.pallas import tpu as pltpu

# Logical dims of FC1: Linear(6 -> 6) -> ReLU -> Linear(6 -> 4) -> ReLU
IN_F = 6
HID_F = 6
OUT_F = 4

# Padded feature width: features + one "ones" row (bias fold), rounded to the
# f32 sublane quantum (8).
FEAT_PAD = 8
X_ONES_ROW = IN_F      # row of x^T that is constant 1.0 (folds b1)
H_ONES_ROW = HID_F     # row of h^T that is constant 1.0 (folds b2)

P_ROWS = 2 * FEAT_PAD  # packed-parameter slab shape: (16, 8) f32
LANE = 128             # lane-dense batch-tile quantum
STEP_CAP = 8192        # max batch columns per grid step
STEP_MIN = 1024        # don't split below this many columns per step


def fc1_kernel(x_ref, p_ref, o_ref):
    w1t = p_ref[0:FEAT_PAD, :]              # (8, 8)  W1^T with b1 folded in
    w2t = p_ref[FEAT_PAD:2 * FEAT_PAD, :]   # (8, 8)  W2^T with b2 folded in
    # Layer 1: (8, 8) @ (8, tm) -> (8, tm); batch stays on the lane axis.
    h = jnp.maximum(
        jnp.dot(w1t, x_ref[...], preferred_element_type=jnp.float32), 0.0)
    # Layer 2 + final ReLU, stored lane-dense.
    y = jnp.dot(w2t, h, preferred_element_type=jnp.float32)
    o_ref[...] = jnp.maximum(y, 0.0).astype(o_ref.dtype)


def pack_params(w1, b1, w2, b2):
    """Pack (in, out)-layout weights + biases into one (16, 8) f32 slab.

    Rows [0, 8):  W1^T, with b1 in column X_ONES_ROW and a 1.0 at
                  [H_ONES_ROW, X_ONES_ROW] so the ones-row propagates to h^T.
    Rows [8, 16): W2^T, with b2 in column H_ONES_ROW.
    """
    p = jnp.zeros((P_ROWS, FEAT_PAD), jnp.float32)
    # Layer 1: h^T = relu(W1aug @ x^T)
    p = p.at[:HID_F, :IN_F].set(jnp.asarray(w1, jnp.float32).T)
    p = p.at[:HID_F, X_ONES_ROW].set(jnp.asarray(b1, jnp.float32))
    p = p.at[H_ONES_ROW, X_ONES_ROW].set(1.0)
    # Layer 2: y^T = relu(W2aug @ h^T)
    p = p.at[FEAT_PAD:FEAT_PAD + OUT_F, :HID_F].set(
        jnp.asarray(w2, jnp.float32).T)
    p = p.at[FEAT_PAD:FEAT_PAD + OUT_F, H_ONES_ROW].set(
        jnp.asarray(b2, jnp.float32))
    return p


def _round_up(n, m):
    return ((n + m - 1) // m) * m


def _cdiv(a, b):
    return (a + b - 1) // b


def _batch_tiling(batch):
    """Pick (b_pad, tm): lane-dense tiles, <= STEP_CAP columns per step,
    >=2 steps when each step still has >= STEP_MIN columns (v7x megacore)."""
    b_pad = _round_up(max(batch, 1), LANE)
    n_steps = _cdiv(b_pad, STEP_CAP)
    if n_steps == 1 and b_pad >= 2 * STEP_MIN:
        n_steps = 2
    tm = _round_up(_cdiv(b_pad, n_steps), LANE)
    b_pad = _round_up(b_pad, tm)   # at most one extra tile of padding
    return b_pad, tm


@jax.jit
def fc1_forward_pallas(x, packed_params):
    """x: (B, 6) f32; packed_params: (16, 8) f32 from pack_params()."""
    B = x.shape[0]
    b_pad, tm = _batch_tiling(B)
    # Transposed, lane-dense activation slab: features on sublanes (8 rows),
    # batch on lanes.  Row X_ONES_ROW is the constant-ones bias row.
    x_t = jnp.zeros((FEAT_PAD, b_pad), jnp.float32)
    x_t = x_t.at[X_ONES_ROW, :].set(1.0)
    x_t = x_t.at[:IN_F, :B].set(x.astype(jnp.float32).T)

    out_t = pl.pallas_call(
        fc1_kernel,
        out_shape=jax.ShapeDtypeStruct((FEAT_PAD, b_pad), jnp.float32),
        grid_spec=pltpu.PrefetchScalarGridSpec(
            num_scalar_prefetch=0,
            grid=(b_pad // tm,),
            in_specs=[
                pl.BlockSpec((FEAT_PAD, tm), lambda i: (0, i)),      # x^T tile
                pl.BlockSpec((P_ROWS, FEAT_PAD), lambda i: (0, 0)),  # params
            ],
            out_specs=pl.BlockSpec((FEAT_PAD, tm), lambda i: (0, i)),
        ),
        compiler_params=pltpu.CompilerParams(
            dimension_semantics=("parallel",)),
    )(x_t, packed_params)
    # Only the first OUT_F rows / B columns are meaningful.
    return out_t[:OUT_F, :B].T


def fc1_reference(x, w1, b1, w2, b2):
    h = jnp.maximum(x @ w1 + b1, 0.0)
    return jnp.maximum(h @ w2 + b2, 0.0)


def fc1_forward(x, w1, b1, w2, b2, *, pallas_min_batch=1024):
    """Dispatcher: at tiny batches the Pallas call is pure launch overhead, so
    use the plain fused XLA path; use the kernel for large batches."""
    if x.shape[0] < pallas_min_batch:
        return fc1_reference(x, w1, b1, w2, b2)
    return fc1_forward_pallas(x, pack_params(w1, b1, w2, b2))


def init_params(key):
    # Deterministic init mimicking nn.Linear's U(-1/sqrt(fan_in), 1/sqrt(fan_in)).
    k1, k2, k3, k4 = jax.random.split(key, 4)
    bound1 = 1.0 / jnp.sqrt(float(IN_F))    # fc1 fan_in = 6
    bound2 = 1.0 / jnp.sqrt(float(HID_F))   # fc2 fan_in = 6
    # PyTorch stores weight as (out, in); we keep (in, out) for x @ W.
    w1 = jax.random.uniform(k1, (IN_F, HID_F), jnp.float32, -bound1, bound1)
    b1 = jax.random.uniform(k2, (HID_F,), jnp.float32, -bound1, bound1)
    w2 = jax.random.uniform(k3, (HID_F, OUT_F), jnp.float32, -bound2, bound2)
    b2 = jax.random.uniform(k4, (OUT_F,), jnp.float32, -bound2, bound2)
    return w1, b1, w2, b2


if __name__ == "__main__":
    key = jax.random.PRNGKey(0)
    kx, kx2, kp = jax.random.split(key, 3)
    w1, b1, w2, b2 = init_params(kp)
    packed = pack_params(w1, b1, w2, b2)    # one-time, 512 B

    # Small demo batch — exercise the Pallas kernel directly.
    B = 8
    x = jax.random.normal(kx, (B, IN_F), jnp.float32)
    out = jax.block_until_ready(fc1_forward_pallas(x, packed))
    ref = fc1_reference(x, w1, b1, w2, b2)
    assert out.shape == (B, OUT_F)
    assert jnp.allclose(out, ref, atol=1e-4, rtol=1e-4)

    # Larger batch — exercises the 2-step lane-dense grid (both v7x TCs)
    # and the batch-padding path (2500 -> 2560 columns, tm = 1280).
    B2 = 2500
    x2 = jax.random.normal(kx2, (B2, IN_F), jnp.float32)
    out2 = jax.block_until_ready(fc1_forward_pallas(x2, packed))
    ref2 = fc1_reference(x2, w1, b1, w2, b2)
    assert out2.shape == (B2, OUT_F)
    assert jnp.allclose(out2, ref2, atol=1e-4, rtol=1e-4)

    print("KERNEL_OK")
</pallas_src>

<mosaic_0001>
module attributes {stable_mosaic.version = 11 : i64} {
  func.func @fc1_kernel(%arg0: i32, %arg1: memref<8x128xf32, #tpu.memory_space<vmem>>, %arg2: memref<16x8xf32, #tpu.memory_space<vmem>>, %arg3: memref<8x128xf32, #tpu.memory_space<vmem>>) attributes {dimension_semantics = [#tpu.dimension_semantics<parallel>], iteration_bounds = array<i64: 1>, scalar_prefetch = 0 : i64, scratch_operands = 0 : i64, tpu.core_type = #tpu.core_type<tc>, window_params = [{transform_indices = @transform_0, window_bounds = array<i64: 8, 128>}, {pipeline_mode = #tpu.pipeline_mode<synchronous>, transform_indices = @transform_1, window_bounds = array<i64: 16, 8>}, {transform_indices = @transform_2, window_bounds = array<i64: 8, 128>}]} {
    %c0 = arith.constant 0 : index
    %c0_0 = arith.constant 0 : index
    %0 = vector.load %arg2[%c0, %c0_0] : memref<16x8xf32, #tpu.memory_space<vmem>>, vector<8x8xf32>
    %c8 = arith.constant 8 : index
    %c0_1 = arith.constant 0 : index
    %1 = vector.load %arg2[%c8, %c0_1] : memref<16x8xf32, #tpu.memory_space<vmem>>, vector<8x8xf32>
    %c0_2 = arith.constant 0 : index
    %c0_3 = arith.constant 0 : index
    %2 = vector.load %arg1[%c0_2, %c0_3] : memref<8x128xf32, #tpu.memory_space<vmem>>, vector<8x128xf32>
    %cst = arith.constant dense<0.000000e+00> : vector<8x128xf32>
    %3 = tpu.matmul %0, %2, %cst {dimension_numbers = #tpu.dot_dimension_numbers<[1], [0], [0], [1], [0, 0, 1, 1], [], []>} : vector<8x8xf32>, vector<8x128xf32>, vector<8x128xf32> -> vector<8x128xf32>
    %cst_4 = arith.constant 0.000000e+00 : f32
    %4 = vector.broadcast %cst_4 : f32 to vector<8x128xf32>
    %5 = arith.maximumf %3, %4 : vector<8x128xf32>
    %cst_5 = arith.constant dense<0.000000e+00> : vector<8x128xf32>
    %6 = tpu.matmul %1, %5, %cst_5 {dimension_numbers = #tpu.dot_dimension_numbers<[1], [0], [0], [1], [0, 0, 1, 1], [], []>} : vector<8x8xf32>, vector<8x128xf32>, vector<8x128xf32> -> vector<8x128xf32>
    %cst_6 = arith.constant 0.000000e+00 : f32
    %7 = vector.broadcast %cst_6 : f32 to vector<8x128xf32>
    %8 = arith.maximumf %6, %7 : vector<8x128xf32>
    %c0_7 = arith.constant 0 : index
    %c0_8 = arith.constant 0 : index
    %9 = vector.load %arg3[%c0_7, %c0_8] : memref<8x128xf32, #tpu.memory_space<vmem>>, vector<8x128xf32>
    tpu.vector_store %arg3[%c0_7, %c0_8], %8 {strides = array<i32>} : memref<8x128xf32, #tpu.memory_space<vmem>>, vector<8x128xf32>,
    return
  }
  func.func @transform_0(%arg0: i32) -> (i32, i32) {
    %c0_i32 = arith.constant 0 : i32
    %c0_i32_0 = arith.constant 0 : i32
    return %c0_i32, %arg0 : i32, i32
  }
  func.func @transform_1(%arg0: i32) -> (i32, i32) {
    %c0_i32 = arith.constant 0 : i32
    %c0_i32_0 = arith.constant 0 : i32
    %c0_i32_1 = arith.constant 0 : i32
    return %c0_i32, %c0_i32_0 : i32, i32
  }
  func.func @transform_2(%arg0: i32) -> (i32, i32) {
    %c0_i32 = arith.constant 0 : i32
    %c0_i32_0 = arith.constant 0 : i32
    return %c0_i32, %arg0 : i32, i32
  }
}

</mosaic_0001>

<llo_original>
// kernel: fc1_forward_pallas.1
$region0: #{fc1_forward_pallas.1}
  #allocation0 [shape = 'u32[]', space=smem, size = 0x4, offset = 0x4, fixed_abs, tag = 'smem constant byte address 0x4 - core index']
  #allocation1 [shape = 'u32[144,128]{1,0:T(1,128)}', space=vmem, size = 0x12000, scoped, tag = 'internal scratch']
  %s0 = inlined_call_operand.vmem [shape: f32[8,128], index: 0, kind: input, shape index: {}]
  %s1 = inlined_call_operand.vmem [shape: f32[16,8], index: 1, kind: input, shape index: {}]
  %s2 = inlined_call_operand.vmem [shape: f32[8,128], index: 2, kind: output, shape index: {}]
  %s3 = sld [smem:[#allocation0]]
  $region18: #{fc1_forward_pallas.1} parent=0
    _
  %s5 = ssub.s32 1, %s3
  %s6 = scalar_select 0, %s5, %s3
  // Predicated region
  $region2: #{fc1_forward_pallas.1} parent=0 // pred_check
    _
  $region3: #{fc1_forward_pallas.1} parent=0 // pred_check_branch
    %8 = sbr.rel (0) target = $region5
  $region4: #{fc1_forward_pallas.1} parent=0 // pred_region
    _
  $region5: #{fc1_forward_pallas.1} parent=0 // pred_fallthru
    _
  // Predicated region
  $region6: #{fc1_forward_pallas.1} parent=0 // pred_check
    _
  $region7: #{fc1_forward_pallas.1} parent=0 // pred_check_branch
    %10 = sbr.rel (0) target = $region9
  $region8: #{fc1_forward_pallas.1} parent=0 // pred_region
    _
  $region9: #{fc1_forward_pallas.1} parent=0 // pred_fallthru
    _
  %v11 = vld [vmem:[%s1] sm:$0xff]
  %v12 = vld [vmem:[%s1 + $0x8] sm:$0xff]
  %v13 = vld [vmem:[%s0] sm:$0xff]
  %vm14 = vcmask 64512
  %v16 = vsel %vm14, %v11, 0
  %18 = vmatprep.subr.mxu0 0.0
  %19 = vmatpush1.msra.mxu0 %v13
  %20 = vmatprep.subr.mxu0 0.0
  %21 = vmatpush1.msra.mxu0 0.0
  %22 = vmatprep.subr.mxu0 0.0
  %23 = vmatpush1.msra.mxu0 0.0
  %24 = vmatprep.subr.mxu0 0.0
  %25 = vmatpush1.msra.mxu0 0.0
  %26 = vmatprep.subr.mxu0 0.0
  %27 = vmatpush1.msra.mxu0 0.0
  %28 = vmatprep.subr.mxu0 0.0
  %29 = vmatpush1.msra.mxu0 0.0
  %30 = vmatprep.subr.mxu0 0.0
  %31 = vmatpush1.msra.mxu0 0.0
  %32 = vmatprep.subr.mxu0 0.0
  %33 = vmatpush1.msra.mxu0 0.0
  %34 = vmatprep.subr.mxu0 0.0
  %35 = vmatpush1.msra.mxu0 0.0
  %36 = vmatprep.subr.mxu0 0.0
  %37 = vmatpush1.msra.mxu0 0.0
  %38 = vmatprep.subr.mxu0 0.0
  %39 = vmatpush1.msra.mxu0 0.0
  %40 = vmatprep.subr.mxu0 0.0
  %41 = vmatpush1.msra.mxu0 0.0
  %42 = vmatprep.subr.mxu0 0.0
  %43 = vmatpush1.msra.mxu0 0.0
  %44 = vmatprep.subr.mxu0 0.0
  %45 = vmatpush1.msra.mxu0 0.0
  %46 = vmatprep.subr.mxu0 0.0
  %47 = vmatpush1.msra.mxu0 0.0
  %48 = vmatprep.subr.mxu0 0.0
  %49 = vmatpush1.msra.mxu0 0.0
  %50 = vmatprep.subr.mxu0 0.0
  %51 = vmatpush1.msra.mxu0 0.0
  %52 = vmatprep.subr.mxu0 0.0
  %53 = vmatpush1.msra.mxu0 0.0
  %54 = vmatprep.subr.mxu0 0.0
  %55 = vmatpush1.msra.mxu0 0.0
  %56 = vmatprep.subr.mxu0 0.0
  %57 = vmatpush1.msra.mxu0 0.0
  %58 = vmatprep.subr.mxu0 0.0
  %59 = vmatpush1.msra.mxu0 0.0
  %60 = vmatprep.subr.mxu0 0.0
  %61 = vmatpush1.msra.mxu0 0.0
  %62 = vmatprep.subr.mxu0 0.0
  %63 = vmatpush1.msra.mxu0 0.0
  %64 = vmatprep.subr.mxu0 0.0
  %65 = vmatpush1.msra.mxu0 0.0
  %66 = vmatprep.subr.mxu0 0.0
  %67 = vmatpush1.msra.mxu0 0.0
  %68 = vmatprep.subr.mxu0 0.0
  %69 = vmatpush1.msra.mxu0 0.0
  %70 = vmatprep.subr.mxu0 0.0
  %71 = vmatpush1.msra.mxu0 0.0
  %72 = vmatprep.subr.mxu0 0.0
  %73 = vmatpush1.msra.mxu0 0.0
  %74 = vmatprep.subr.mxu0 0.0
  %75 = vmatpush1.msra.mxu0 0.0
  %76 = vmatprep.subr.mxu0 0.0
  %77 = vmatpush1.msra.mxu0 0.0
  %78 = vmatprep.subr.mxu0 0.0
  %79 = vmatpush1.msra.mxu0 0.0
  %80 = vmatprep.subr.mxu0 0.0
  %81 = vmatpush1.msra.mxu0 0.0
  %82 = vmatprep.mubr.f32.mxu0 0.0
  %83 = vmatmul.mubr.f32.gmra.mrb[0].mxu0 %v16
  %v84 = vpop.f32.mrb[0].mxu0
  %v85 = vadd.f32 0.0, %v84
  %v86 = vpop.f32.mrb[0].mxu0
  %87 = vdwg.mxu0
  %v88 = vmax.f32 %v85, 0.0
  %v90 = vsel %vm14, %v12, 0
  %92 = vmatprep.subr.mxu0 0.0
  %93 = vmatpush1.msra.mxu0 %v88
  %94 = vmatprep.subr.mxu0 0.0
  %95 = vmatpush1.msra.mxu0 0.0
  %96 = vmatprep.subr.mxu0 0.0
  %97 = vmatpush1.msra.mxu0 0.0
  %98 = vmatprep.subr.mxu0 0.0
  %99 = vmatpush1.msra.mxu0 0.0
  %100 = vmatprep.subr.mxu0 0.0
  %101 = vmatpush1.msra.mxu0 0.0
  %102 = vmatprep.subr.mxu0 0.0
  %103 = vmatpush1.msra.mxu0 0.0
  %104 = vmatprep.subr.mxu0 0.0
  %105 = vmatpush1.msra.mxu0 0.0
  %106 = vmatprep.subr.mxu0 0.0
  %107 = vmatpush1.msra.mxu0 0.0
  %108 = vmatprep.subr.mxu0 0.0
  %109 = vmatpush1.msra.mxu0 0.0
  %110 = vmatprep.subr.mxu0 0.0
  %111 = vmatpush1.msra.mxu0 0.0
  %112 = vmatprep.subr.mxu0 0.0
  %113 = vmatpush1.msra.mxu0 0.0
  %114 = vmatprep.subr.mxu0 0.0
  %115 = vmatpush1.msra.mxu0 0.0
  %116 = vmatprep.subr.mxu0 0.0
  %117 = vmatpush1.msra.mxu0 0.0
  %118 = vmatprep.subr.mxu0 0.0
  %119 = vmatpush1.msra.mxu0 0.0
  %120 = vmatprep.subr.mxu0 0.0
  %121 = vmatpush1.msra.mxu0 0.0
  %122 = vmatprep.subr.mxu0 0.0
  %123 = vmatpush1.msra.mxu0 0.0
  %124 = vmatprep.subr.mxu0 0.0
  %125 = vmatpush1.msra.mxu0 0.0
  %126 = vmatprep.subr.mxu0 0.0
  %127 = vmatpush1.msra.mxu0 0.0
  %128 = vmatprep.subr.mxu0 0.0
  %129 = vmatpush1.msra.mxu0 0.0
  %130 = vmatprep.subr.mxu0 0.0
  %131 = vmatpush1.msra.mxu0 0.0
  %132 = vmatprep.subr.mxu0 0.0
  %133 = vmatpush1.msra.mxu0 0.0
  %134 = vmatprep.subr.mxu0 0.0
  %135 = vmatpush1.msra.mxu0 0.0
  %136 = vmatprep.subr.mxu0 0.0
  %137 = vmatpush1.msra.mxu0 0.0
  %138 = vmatprep.subr.mxu0 0.0
  %139 = vmatpush1.msra.mxu0 0.0
  %140 = vmatprep.subr.mxu0 0.0
  %141 = vmatpush1.msra.mxu0 0.0
  %142 = vmatprep.subr.mxu0 0.0
  %143 = vmatpush1.msra.mxu0 0.0
  %144 = vmatprep.subr.mxu0 0.0
  %145 = vmatpush1.msra.mxu0 0.0
  %146 = vmatprep.subr.mxu0 0.0
  %147 = vmatpush1.msra.mxu0 0.0
  %148 = vmatprep.subr.mxu0 0.0
  %149 = vmatpush1.msra.mxu0 0.0
  %150 = vmatprep.subr.mxu0 0.0
  %151 = vmatpush1.msra.mxu0 0.0
  %152 = vmatprep.subr.mxu0 0.0
  %153 = vmatpush1.msra.mxu0 0.0
  %154 = vmatprep.subr.mxu0 0.0
  %155 = vmatpush1.msra.mxu0 0.0
  %156 = vmatprep.mubr.f32.mxu0 0.0
  %157 = vmatmul.mubr.f32.gmra.mrb[0].mxu0 %v90
  %v158 = vpop.f32.mrb[0].mxu0
  %v159 = vadd.f32 0.0, %v158
  %v160 = vpop.f32.mrb[0].mxu0
  %161 = vdwg.mxu0
  %v162 = vmax.f32 %v159, 0.0
  %163 = vst [vmem:[%s2] sm:$0xff] %v162
  // Predicated region
  $region10: #{fc1_forward_pallas.1} parent=0 // pred_check
    _
  $region11: #{fc1_forward_pallas.1} parent=0 // pred_check_branch
    %165 = sbr.rel (0) target = $region13
  $region12: #{fc1_forward_pallas.1} parent=0 // pred_region
    _
  $region13: #{fc1_forward_pallas.1} parent=0 // pred_fallthru
    _
  // Predicated region
  $region14: #{fc1_forward_pallas.1} parent=0 // pred_check
    _
  $region15: #{fc1_forward_pallas.1} parent=0 // pred_check_branch
    %167 = sbr.rel (0) target = $region17
  $region16: #{fc1_forward_pallas.1} parent=0 // pred_region
    _
  $region17: #{fc1_forward_pallas.1} parent=0 // pred_fallthru
    _

</llo_original>
